<compile_context>
chip_gen: v7x
topology: tpu7x:2x2x1
jax: 0.10.0
libtpu: 0.0.40
codegen_flags: <defaults>
</compile_context>

<pallas_src>
import jax
import jax.numpy as jnp
from jax.experimental import pallas as pl
from jax.experimental.pallas import tpu as pltpu


def _model_kernel(x_ref, o_ref):
    # x_ref: (1, N) f32 in SMEM; o_ref: (1, 1) f32 in SMEM.
    # Only element [0, 0] contributes; the whole op chain == 6 * x[0, 0]
    # (bit-exact, see header).  Pure scalar path: sld -> smul -> sst.
    o_ref[0, 0] = x_ref[0, 0] * 6.0


@jax.jit
def model_forward(x):
    """x: (1, N) float32 -> scalar float32 (== result of the PyTorch forward)."""
    assert x.ndim == 2 and x.shape[0] == 1, "model requires dim-0 size 1 for broadcast"
    out = pl.pallas_call(
        _model_kernel,
        out_shape=jax.ShapeDtypeStruct((1, 1), x.dtype),
        in_specs=[pl.BlockSpec(memory_space=pltpu.MemorySpace.SMEM)],
        out_specs=pl.BlockSpec(memory_space=pltpu.MemorySpace.SMEM),
        cost_estimate=pl.CostEstimate(flops=1, transcendentals=0, bytes_accessed=8),
    )(x)
    return out[0, 0]


def model_forward_ref(x):
    # Pure-JAX reference: the literal op chain from the PyTorch module.
    y = jnp.concatenate([x, x, x], axis=0)
    y = y + x
    z = (y + y + y)[0]
    return z[0]


if __name__ == "__main__":
    key = jax.random.PRNGKey(0)
    # Small shape consistent with the module: the broadcast in `y + x`
    # requires dim 0 == 1 (the spec's literal (2, 2) example would not
    # broadcast), so we use (1, 8).
    x = jax.random.normal(key, (1, 8), dtype=jnp.float32)

    result = model_forward(x)
    jax.block_until_ready(result)

    expected = model_forward_ref(x)
    assert jnp.allclose(result, expected, rtol=1e-6, atol=1e-6), (result, expected)

    print("KERNEL_OK")
</pallas_src>

<mosaic_0001>
module attributes {stable_mosaic.version = 11 : i64} {
  func.func @_model_kernel(%arg0: memref<1x8xf32, #tpu.memory_space<smem>>, %arg1: memref<1x1xf32, #tpu.memory_space<smem>>) attributes {dimension_semantics = [], scalar_prefetch = 0 : i64, scratch_operands = 0 : i64, tpu.core_type = #tpu.core_type<tc>} {
    %c0 = arith.constant 0 : index
    %c0_0 = arith.constant 0 : index
    %0 = memref.load %arg0[%c0, %c0_0] : memref<1x8xf32, #tpu.memory_space<smem>>
    %cst = arith.constant 6.000000e+00 : f32
    %1 = arith.mulf %0, %cst : f32
    %c0_1 = arith.constant 0 : index
    %c0_2 = arith.constant 0 : index
    %2 = memref.load %arg1[%c0_1, %c0_2] : memref<1x1xf32, #tpu.memory_space<smem>>
    memref.store %1, %arg1[%c0_1, %c0_2] : memref<1x1xf32, #tpu.memory_space<smem>>
    return
  }
}

</mosaic_0001>

<llo_original>
// kernel: model_forward.1
$region0: #{model_forward.1}
  #allocation0 [shape = 'u32[]', space=smem, size = 0x4, offset = 0x4, fixed_abs, tag = 'smem constant byte address 0x4 - core index']
  #allocation1 [shape = 'u32[144,128]{1,0:T(1,128)}', space=vmem, size = 0x12000, scoped, tag = 'internal scratch']
  %s0 = inlined_call_operand.hbm [shape: f32[1,8], index: 0, kind: input, shape index: {}]
  %s1 = inlined_call_operand.hbm [shape: f32[1,1], index: 1, kind: output, shape index: {}]
  %s2 = sld [smem:[#allocation0]]
  $region18: #{model_forward.1} parent=0
    _
  %s4 = ssub.s32 1, %s2
  %s5 = scalar_select 0, %s4, %s2
  $region1: #{model_forward.1} parent=0
    #allocation2 [shape = 'u8[512]{0}', space=smem, size = 0x200, scoped, tag = 'input window, operand 0, single buffered']
    #allocation3 [shape = 's32[1]{0}', space=sflag, size = 0x4, scoped, tag = 'scoped memory for model_forward.1']
    #allocation4 [shape = 's32[1]{0}', space=sflag, size = 0x4, scoped, tag = 'scoped memory for model_forward.1']
    #allocation5 [shape = 'u8[512]{0}', space=smem, size = 0x200, scoped, tag = 'output window, operand 0, single buffered']
    %6 = vsyncpa [#allocation3], 0
    %7 = vsyncpa [#allocation4], 0
    // Predicated region
    $region2: #{model_forward.1} parent=1 // pred_check
      _
    $region3: #{model_forward.1} parent=1 // pred_check_branch
      %9 = sbr.rel (0) target = $region5
    $region4: #{model_forward.1} parent=1 // pred_region
      %s11 = ssub.s32 16, 16
      %12 = vsyncadd [#allocation3], %s11
      %15 = dma.hbm_to_smem %s0, 16, [#allocation2], [#allocation3]
    $region5: #{model_forward.1} parent=1 // pred_fallthru
      _
    // Predicated region
    $region6: #{model_forward.1} parent=1 // pred_check
      _
    $region7: #{model_forward.1} parent=1 // pred_check_branch
      %17 = sbr.rel (0) target = $region9
    $region8: #{model_forward.1} parent=1 // pred_region
      %18 = dma.done [#allocation3], 16
    $region9: #{model_forward.1} parent=1 // pred_fallthru
      _
    %19 = sfence
    %s20 = sld [smem:[#allocation2]]
    %s21 = smul.f32 %s20, 6.0
    %s22 = scalar_lea.smem [#allocation5], 0
    %23 = sst [smem:[%s22]] %s21
    // Predicated region
    $region10: #{model_forward.1} parent=1 // pred_check
      _
    $region11: #{model_forward.1} parent=1 // pred_check_branch
      %25 = sbr.rel (0) target = $region13
    $region12: #{model_forward.1} parent=1 // pred_region
      %s27 = ssub.s32 16, 16
      %28 = vsyncadd [#allocation4], %s27
      %31 = dma.smem_to_hbm [#allocation5], 16, %s1, [#allocation4]
    $region13: #{model_forward.1} parent=1 // pred_fallthru
      _
    // Predicated region
    $region14: #{model_forward.1} parent=1 // pred_check
      _
    $region15: #{model_forward.1} parent=1 // pred_check_branch
      %33 = sbr.rel (0) target = $region17
    $region16: #{model_forward.1} parent=1 // pred_region
      %34 = dma.done [#allocation4], 16
    $region17: #{model_forward.1} parent=1 // pred_fallthru
      _
    %35 = sfence
    %36 = vsyncpa [#allocation3], 1
    %37 = vsyncpa [#allocation4], 1

</llo_original>
